<compile_context>
chip_gen: v5e
topology: v5e:2x2
jax: 0.10.0
libtpu: 0.0.40
codegen_flags: <defaults>
</compile_context>

<pallas_src>
from functools import partial

import jax
import jax.numpy as jnp
from jax import lax
from jax.experimental import pallas as pl
from jax.experimental.pallas import tpu as pltpu


def _dtd_gemm_kernel(r_ref, x_ref, w_ref, out_ref):
    """One row tile: Zp = Xcol @ Wp^T ; S = R / Zp ; Ccol = S @ Wp."""
    # First matmul as A @ B^T (contract the K axis of both operands) so only one
    # resident copy of Wp [Coutp, Kp] is needed in VMEM.
    zp = lax.dot_general(
        x_ref[...], w_ref[...],
        dimension_numbers=(((1,), (1,)), ((), ())),
        preferred_element_type=jnp.float32)
    # Exact f32 divide.  Padded Cout columns have R == 0 and Zp > 0, so S == 0 there;
    # padded M rows have X == 1, R == 0  ->  Zp > 0, S == 0.
    s = r_ref[...].astype(jnp.float32) / zp
    # Second matmul in natural [TM, Coutp] x [Coutp, Kp] MXU form.
    c = jnp.dot(s.astype(w_ref.dtype), w_ref[...], preferred_element_type=jnp.float32)
    out_ref[...] = c.astype(out_ref.dtype)


def _im2col_3d(x, kernel_shape, padding):
    """Unfold [N, C, D, H, W] -> [N*Do*Ho*Wo, C*kD*kH*kW] (stride=1, dilation=1).

    Column order is (c, kd, kh, kw), matching W.reshape(Cout, -1) of a PyTorch
    [Cout, Cin, kD, kH, kW] weight.
    """
    kD, kH, kW = kernel_shape
    pD, pH, pW = padding
    xp = jnp.pad(x, ((0, 0), (0, 0), (pD, pD), (pH, pH), (pW, pW)))
    N, C, Dp, Hp, Wpd = xp.shape
    Do, Ho, Wo = Dp - kD + 1, Hp - kH + 1, Wpd - kW + 1
    cols = []
    for dz in range(kD):
        for dy in range(kH):
            for dx in range(kW):
                cols.append(xp[:, :, dz:dz + Do, dy:dy + Ho, dx:dx + Wo])
    patches = jnp.stack(cols, axis=2)              # [N, C, kD*kH*kW, Do, Ho, Wo]
    patches = patches.transpose(0, 3, 4, 5, 1, 2)  # [N, Do, Ho, Wo, C, kD*kH*kW]
    return patches.reshape(N * Do * Ho * Wo, C * kD * kH * kW)


def _vmem_capacity_bytes():
    """Per-TensorCore VMEM capacity; conservative fallback if the query is unavailable."""
    try:
        return int(pltpu.get_tpu_info().vmem_capacity_bytes)
    except Exception:
        return 64 * 1024 * 1024  # v7x per-TC size; safe lower bound on all generations


def _choose_block_rows(M, Kp, Coutp, in_bytes, out_bytes, vmem_budget):
    """Largest row tile (from a fixed ladder) whose double-buffered streams + resident
    weight fit the VMEM budget, while keeping >= ~8 grid steps when M allows."""
    weight_bytes = 2 * Coutp * Kp * in_bytes                              # resident Wp (2 bufs)
    per_row = 2 * (Kp * in_bytes + Coutp * in_bytes + Kp * out_bytes)     # X + R in, C out (2 bufs)
    for br in (1024, 512, 256, 128):
        fits = weight_bytes + br * per_row <= vmem_budget
        enough_steps = (-(-M // br) >= 8) or br == 128
        if fits and enough_steps:
            return br
    return 128


@partial(jax.jit, static_argnames=("padding", "block_rows", "compute_dtype"))
def conv3d_dtd(R, X, W, *, padding=(0, 0, 0), block_rows=None,
               compute_dtype=jnp.bfloat16):
    """z+ Deep Taylor Decomposition through a Conv3d layer.

    R: [N, Cout, Do, Ho, Wo]    relevance at the layer output
    X: [N, Cin, D, H, W]        layer input (z+ rule assumes X >= 0, e.g. post-ReLU)
    W: [Cout, Cin, kD, kH, kW]  Conv3d weight, PyTorch layout
    Returns relevance on the layer input (same shape as X).
    """
    f32 = jnp.float32
    N, Cin, D, H, Wd = X.shape
    Cout, Cin_w, kD, kH, kW = W.shape
    assert Cin_w == Cin, "groups != 1 not supported"
    pD, pH, pW = padding
    Do, Ho, Wo = D + 2 * pD - kD + 1, H + 2 * pH - kH + 1, Wd + 2 * pW - kW + 1
    assert R.shape == (N, Cout, Do, Ho, Wo)

    Xe = X.astype(f32) + 1e-7                    # X + eps (also used in the final multiply)
    Wp = jnp.maximum(W.astype(f32), 1e-7)        # clamp(min=1e-7), hoisted out of the kernel

    # Unfold once; keep the vjp so the fold-back (col2im scatter-add == conv_transpose3d
    # for stride=1) is the exact adjoint of the unfold that produced Zp.
    unfold = lambda x: _im2col_3d(x, (kD, kH, kW), (pD, pH, pW))
    X_col, fold = jax.vjp(unfold, Xe)            # X_col: [M, K], f32
    M, K = X_col.shape

    Wmat = Wp.reshape(Cout, K)                                        # [Cout, K]
    R_col = R.astype(f32).transpose(0, 2, 3, 4, 1).reshape(M, Cout)   # [M, Cout]

    # Lane-dense K and Cout: pad both to multiples of 128.
    #   * padded K columns:   X = 0, W = 1e-7  -> Zp unchanged.
    #   * padded Cout rows:   W = 1e-7 (NOT 0) and R columns = 0 -> padded Zp > 0, S = 0.
    #   * padded M rows:      X = 1, R = 0     -> Zp > 0, S = 0, C = 0 (dropped below).
    Kp = pl.cdiv(K, 128) * 128
    Coutp = pl.cdiv(Cout, 128) * 128

    in_bytes = jnp.dtype(compute_dtype).itemsize
    out_bytes = in_bytes                          # kernel output emitted in compute dtype

    # Generation-aware scoped-VMEM limit: ~38 MiB on v7x (64 MiB/TC), 64 MiB on v5e/v6e.
    vmem_cap = _vmem_capacity_bytes()
    vmem_limit = int(min(int(vmem_cap * 0.6), 64 * 1024 * 1024))
    # Tile budget leaves room inside the limit for zp/s temporaries, the in-kernel
    # W^T relayout of the first matmul and register spills.
    tile_budget = int(vmem_limit * 0.75)
    if block_rows is None:
        block_rows = _choose_block_rows(M, Kp, Coutp, in_bytes, out_bytes, tile_budget)
    Mp = pl.cdiv(M, block_rows) * block_rows

    X_colp = jnp.pad(X_col.astype(compute_dtype), ((0, 0), (0, Kp - K)))
    X_colp = jnp.pad(X_colp, ((0, Mp - M), (0, 0)), constant_values=1.0)
    R_colp = jnp.pad(R_col.astype(compute_dtype), ((0, Mp - M), (0, Coutp - Cout)))
    w_c = jnp.pad(Wmat, ((0, Coutp - Cout), (0, Kp - K)),
                  constant_values=1e-7).astype(compute_dtype)          # [Coutp, Kp]

    grid = (Mp // block_rows,)
    cost = pl.CostEstimate(
        flops=int(4 * Mp * Kp * Coutp),                      # two GEMMs
        transcendentals=int(Mp * Coutp),                     # the divide
        bytes_accessed=int((Mp * Kp + Mp * Coutp + Coutp * Kp) * in_bytes
                           + Mp * Kp * out_bytes),
    )

    c_colp = pl.pallas_call(
        _dtd_gemm_kernel,
        out_shape=jax.ShapeDtypeStruct((Mp, Kp), compute_dtype),
        grid=grid,
        in_specs=[
            pl.BlockSpec((block_rows, Coutp), lambda i: (i, 0)),  # R tile    (streamed)
            pl.BlockSpec((block_rows, Kp), lambda i: (i, 0)),     # Xcol tile (streamed)
            pl.BlockSpec((Coutp, Kp), lambda i: (0, 0)),          # Wp (VMEM-resident, DMA'd once)
        ],
        out_specs=pl.BlockSpec((block_rows, Kp), lambda i: (i, 0)),
        compiler_params=pltpu.CompilerParams(
            dimension_semantics=("parallel",),    # megacore-shard the row tiles (v7x)
            vmem_limit_bytes=vmem_limit,
        ),
        cost_estimate=cost,
    )(R_colp, X_colp, w_c)

    # Fold accumulation (27-term scatter-add) stays in f32.
    C_col = c_colp[:M, :K].astype(f32)
    (C,) = fold(C_col)   # col2im scatter-add == F.conv_transpose3d(S, Wp, padding) for stride=1
    # stride=1  =>  C already has X's spatial shape; the module's F.pad(..., 1e-14) is a no-op.
    return (Xe * C).astype(X.dtype)


def _reference_conv3d_dtd(R, X, W, padding):
    """Pure-JAX reference following the PyTorch module (stride=1, dilation=1, groups=1)."""
    f32 = jnp.float32
    Xe = X.astype(f32) + 1e-7
    Wp = jnp.maximum(W.astype(f32), 1e-7)
    conv = lambda x: jax.lax.conv_general_dilated(
        x, Wp, window_strides=(1, 1, 1),
        padding=[(p, p) for p in padding],
        dimension_numbers=("NCDHW", "OIDHW", "NCDHW"),
        precision=jax.lax.Precision.HIGHEST)
    Zp, conv_vjp = jax.vjp(conv, Xe)
    S = R.astype(f32) / Zp
    (C,) = conv_vjp(S)   # gradient of conv3d w.r.t. its input == conv_transpose3d for stride=1
    return Xe * C


if __name__ == "__main__":
    key = jax.random.PRNGKey(0)
    k_w, k_x, k_r = jax.random.split(key, 3)

    # Small Conv3d: Cin=4 -> Cout=64, kernel 3x3x3, padding 1, input 2 x 4 x 8^3.
    N, Cin, Cout, k, Sp = 2, 4, 64, 3, 8
    padding = (1, 1, 1)   # stride=1 -> output spatial == input spatial

    fan_in = Cin * k * k * k
    bound = 1.0 / (fan_in ** 0.5)
    W = jax.random.uniform(k_w, (Cout, Cin, k, k, k), jnp.float32,
                           minval=-bound, maxval=bound)
    X = jax.nn.relu(jax.random.normal(k_x, (N, Cin, Sp, Sp, Sp), jnp.float32))
    R = jax.nn.relu(jax.random.normal(k_r, (N, Cout, Sp, Sp, Sp), jnp.float32))

    out_f32 = jax.block_until_ready(
        conv3d_dtd(R, X, W, padding=padding, compute_dtype=jnp.float32))
    out_bf16 = jax.block_until_ready(
        conv3d_dtd(R, X, W, padding=padding))   # default: bf16 MXU operands, f32 accumulation

    ref = _reference_conv3d_dtd(R, X, W, padding)
    assert out_f32.shape == X.shape and out_bf16.shape == X.shape
    # Tolerances account for the TPU MXU's reduced-precision passes (bf16 operands / outputs,
    # default-precision f32 dots); all quantities are positive so errors stay relative.
    assert jnp.allclose(out_f32, ref, rtol=3e-2, atol=1e-3), "f32-path mismatch vs reference"
    assert jnp.allclose(out_bf16, ref, rtol=6e-2, atol=2e-3), "bf16-path mismatch vs reference"

    print("KERNEL_OK")
</pallas_src>

<mosaic_0001>
module attributes {stable_mosaic.version = 11 : i64} {
  func.func @_dtd_gemm_kernel(%arg0: i32, %arg1: memref<128x128xf32, #tpu.memory_space<vmem>>, %arg2: memref<128x128xf32, #tpu.memory_space<vmem>>, %arg3: memref<128x128xf32, #tpu.memory_space<vmem>>, %arg4: memref<128x128xf32, #tpu.memory_space<vmem>>) attributes {dimension_semantics = [#tpu.dimension_semantics<parallel>], iteration_bounds = array<i64: 8>, scalar_prefetch = 0 : i64, scratch_operands = 0 : i64, tpu.core_type = #tpu.core_type<tc>, window_params = [{transform_indices = @transform_0, window_bounds = array<i64: 128, 128>}, {transform_indices = @transform_1, window_bounds = array<i64: 128, 128>}, {pipeline_mode = #tpu.pipeline_mode<synchronous>, transform_indices = @transform_2, window_bounds = array<i64: 128, 128>}, {transform_indices = @transform_3, window_bounds = array<i64: 128, 128>}]} {
    %c0 = arith.constant 0 : index
    %c0_0 = arith.constant 0 : index
    %0 = vector.load %arg2[%c0, %c0_0] : memref<128x128xf32, #tpu.memory_space<vmem>>, vector<128x128xf32>
    %c0_1 = arith.constant 0 : index
    %c0_2 = arith.constant 0 : index
    %1 = vector.load %arg3[%c0_1, %c0_2] : memref<128x128xf32, #tpu.memory_space<vmem>>, vector<128x128xf32>
    %cst = arith.constant dense<0.000000e+00> : vector<128x128xf32>
    %2 = tpu.matmul %0, %1, %cst {dimension_numbers = #tpu.dot_dimension_numbers<[1], [1], [0], [0], [0, 0, 1, 0], [], []>} : vector<128x128xf32>, vector<128x128xf32>, vector<128x128xf32> -> vector<128x128xf32>
    %c0_3 = arith.constant 0 : index
    %c0_4 = arith.constant 0 : index
    %3 = vector.load %arg1[%c0_3, %c0_4] : memref<128x128xf32, #tpu.memory_space<vmem>>, vector<128x128xf32>
    %4 = arith.divf %3, %2 : vector<128x128xf32>
    %c0_5 = arith.constant 0 : index
    %c0_6 = arith.constant 0 : index
    %5 = vector.load %arg3[%c0_5, %c0_6] : memref<128x128xf32, #tpu.memory_space<vmem>>, vector<128x128xf32>
    %cst_7 = arith.constant dense<0.000000e+00> : vector<128x128xf32>
    %6 = tpu.matmul %4, %5, %cst_7 {dimension_numbers = #tpu.dot_dimension_numbers<[1], [0], [0], [1], [0, 0, 1, 1], [], []>} : vector<128x128xf32>, vector<128x128xf32>, vector<128x128xf32> -> vector<128x128xf32>
    %c0_8 = arith.constant 0 : index
    %c0_9 = arith.constant 0 : index
    %7 = vector.load %arg4[%c0_8, %c0_9] : memref<128x128xf32, #tpu.memory_space<vmem>>, vector<128x128xf32>
    tpu.vector_store %arg4[%c0_8, %c0_9], %6 {strides = array<i32>} : memref<128x128xf32, #tpu.memory_space<vmem>>, vector<128x128xf32>,
    return
  }
  func.func @transform_0(%arg0: i32) -> (i32, i32) {
    %c0_i32 = arith.constant 0 : i32
    %c0_i32_0 = arith.constant 0 : i32
    return %arg0, %c0_i32 : i32, i32
  }
  func.func @transform_1(%arg0: i32) -> (i32, i32) {
    %c0_i32 = arith.constant 0 : i32
    %c0_i32_0 = arith.constant 0 : i32
    return %arg0, %c0_i32 : i32, i32
  }
  func.func @transform_2(%arg0: i32) -> (i32, i32) {
    %c0_i32 = arith.constant 0 : i32
    %c0_i32_0 = arith.constant 0 : i32
    %c0_i32_1 = arith.constant 0 : i32
    return %c0_i32, %c0_i32_0 : i32, i32
  }
  func.func @transform_3(%arg0: i32) -> (i32, i32) {
    %c0_i32 = arith.constant 0 : i32
    %c0_i32_0 = arith.constant 0 : i32
    return %arg0, %c0_i32 : i32, i32
  }
}

</mosaic_0001>

<llo_original>
// kernel: conv3d_dtd.1
$region0: #{conv3d_dtd.1}
  #allocation0 [shape = 'u32[]', space=smem, size = 0x4, offset = 0x4, fixed_abs, tag = 'smem constant byte address 0x4 - core index']
  #allocation1 [shape = 'u32[72,128]{1,0:T(1,128)}', space=vmem, size = 0x9000, scoped, tag = 'internal scratch']
  %s0 = inlined_call_operand.vmem [shape: f32[1024,128], index: 0, kind: input, shape index: {}]
  %s1 = inlined_call_operand.vmem [shape: f32[1024,128], index: 1, kind: input, shape index: {}]
  %s2 = inlined_call_operand.vmem [shape: f32[128,128], index: 2, kind: input, shape index: {}]
  %s3 = inlined_call_operand.vmem [shape: f32[1024,128], index: 3, kind: output, shape index: {}]
  %s4 = sld [smem:[#allocation0]]
  $region45: #{conv3d_dtd.1} parent=0
    _
  %s6 = ssub.s32 1, %s4
  %s7 = scalar_select 0, %s6, %s4
  loop: start=0, step=1, limit=10
  $region2: #{conv3d_dtd.1} parent=0 // loop_pre_header
    _
  $region3: #{conv3d_dtd.1} parent=0 // loop_header
    %s9 = sphi 0, %s13
    %p10 = scmp.ge.s32.totalorder %s9, 10
    %s19 = sphi 0, %s21
    %s22 = sphi 0, %s19
    %s23 = sphi 0, %s22
    %s39 = sphi 0, %s23
    %s45 = sphi 0, %s47
    %s48 = sphi 0, %s45
    %s49 = sphi 0, %s48
    %s65 = sphi 0, %s49
    %s69 = sphi 0, %s69
    %s71 = sphi 0, %s69
    %s72 = sphi 0, %s71
    %s86 = sphi 0, %s72
    %s92 = sphi 0, %s94
    %s95 = sphi 0, %s92
    %s96 = sphi 0, %s95
    %s112 = sphi 0, %s96
  $region4: #{conv3d_dtd.1} parent=0 // loop_header_branch
    %12 = sbr.rel (%p10) target = $region8
  $region5: #{conv3d_dtd.1} parent=0 // loop_body
    %s14 = ssub.s32 %s9, 1
    %s15 = ssub.s32 %s9, 2
    %s16 = sadd.s32 %s9, 1
    %s17 = ssub.s32 %s9, %s16
    %p18 = scmp.eq.s32.totalorder %s17, 0
    %s20 = sadd.s32 %s19, 1
    %s21 = scalar_select %p18, %s19, %s20
    %p24 = pneg %p18
    %p25 = scmp.eq.s32.totalorder %s9, 7
    %p26 = por %p24, %p25
    %p27 = scmp.ne.s32.totalorder %s19, %s22
    %p28 = scmp.eq.s32.totalorder %s9, 0
    %p29 = por %p27, %p28
    %p30 = scmp.ne.s32.totalorder %s19, %s22
    %p31 = scmp.eq.s32.totalorder %s14, 7
    %p32 = por %p30, %p31
    %p33 = scmp.ne.s32.totalorder %s22, %s23
    %p34 = scmp.eq.s32.totalorder %s14, 0
    %p35 = por %p33, %p34
    %p36 = scmp.ne.s32.totalorder %s22, %s23
    %p37 = scmp.eq.s32.totalorder %s15, 7
    %p38 = por %p36, %p37
    %p40 = scmp.ne.s32.totalorder %s23, %s39
    %p41 = scmp.eq.s32.totalorder %s15, 0
    %p42 = por %p40, %p41
    %s43 = ssub.s32 %s9, %s16
    %p44 = scmp.eq.s32.totalorder %s43, 0
    %s46 = sadd.s32 %s45, 1
    %s47 = scalar_select %p44, %s45, %s46
    %p50 = pneg %p44
    %p51 = scmp.eq.s32.totalorder %s9, 7
    %p52 = por %p50, %p51
    %p53 = scmp.ne.s32.totalorder %s45, %s48
    %p54 = scmp.eq.s32.totalorder %s9, 0
    %p55 = por %p53, %p54
    %p56 = scmp.ne.s32.totalorder %s45, %s48
    %p57 = scmp.eq.s32.totalorder %s14, 7
    %p58 = por %p56, %p57
    %p59 = scmp.ne.s32.totalorder %s48, %s49
    %p60 = scmp.eq.s32.totalorder %s14, 0
    %p61 = por %p59, %p60
    %p62 = scmp.ne.s32.totalorder %s48, %s49
    %p63 = scmp.eq.s32.totalorder %s15, 7
    %p64 = por %p62, %p63
    %p66 = scmp.ne.s32.totalorder %s49, %s65
    %p67 = scmp.eq.s32.totalorder %s15, 0
    %p68 = por %p66, %p67
    %s70 = sadd.s32 %s69, 1
    %p73 = scmp.eq.s32.totalorder %s9, 7
    %p74 = scmp.ne.s32.totalorder %s69, %s71
    %p75 = scmp.eq.s32.totalorder %s9, 0
    %p76 = por %p74, %p75
    %p77 = scmp.ne.s32.totalorder %s69, %s71
    %p78 = scmp.eq.s32.totalorder %s14, 7
    %p79 = por %p77, %p78
    %p80 = scmp.ne.s32.totalorder %s71, %s72
    %p81 = scmp.eq.s32.totalorder %s14, 0
    %p82 = por %p80, %p81
    %p83 = scmp.ne.s32.totalorder %s71, %s72
    %p84 = scmp.eq.s32.totalorder %s15, 7
    %p85 = por %p83, %p84
    %p87 = scmp.ne.s32.totalorder %s72, %s86
    %p88 = scmp.eq.s32.totalorder %s15, 0
    %p89 = por %p87, %p88
    %s90 = ssub.s32 %s9, %s16
    %p91 = scmp.eq.s32.totalorder %s90, 0
    %s93 = sadd.s32 %s92, 1
    %s94 = scalar_select %p91, %s92, %s93
    %p97 = pneg %p91
    %p98 = scmp.eq.s32.totalorder %s9, 7
    %p99 = por %p97, %p98
    %p100 = scmp.ne.s32.totalorder %s92, %s95
    %p101 = scmp.eq.s32.totalorder %s9, 0
    %p102 = por %p100, %p101
    %p103 = scmp.ne.s32.totalorder %s92, %s95
    %p104 = scmp.eq.s32.totalorder %s14, 7
    %p105 = por %p103, %p104
    %p106 = scmp.ne.s32.totalorder %s95, %s96
    %p107 = scmp.eq.s32.totalorder %s14, 0
    %p108 = por %p106, %p107
    %p109 = scmp.ne.s32.totalorder %s95, %s96
    %p110 = scmp.eq.s32.totalorder %s15, 7
    %p111 = por %p109, %p110
    %p113 = scmp.ne.s32.totalorder %s96, %s112
    %p114 = scmp.eq.s32.totalorder %s15, 0
    %p115 = por %p113, %p114
    %p116 = scmp.le.s32.totalorder 1, %s9
    %p117 = scmp.lt.s32.totalorder %s9, 9
    %p118 = pnand %p116, %p117
    %p119 = pneg %p118
    // Predicated region
    $region9: #{conv3d_dtd.1} parent=5 // pred_check
      _
    $region10: #{conv3d_dtd.1} parent=5 // pred_check_branch
      %121 = sbr.rel (%p118) target = $region12
    $region11: #{conv3d_dtd.1} parent=5 // pred_region
      %s122 = ssub.s32 %s9, 1
      // Predicated region
      $region13: #{conv3d_dtd.1} parent=11 // pred_check
        %p123 = pneg %p82
      $region14: #{conv3d_dtd.1} parent=11 // pred_check_branch
        %125 = sbr.rel (%p123) target = $region16
      $region15: #{conv3d_dtd.1} parent=11 // pred_region
        _
      $region16: #{conv3d_dtd.1} parent=11 // pred_fallthru
        _
    $region12: #{conv3d_dtd.1} parent=5 // pred_fallthru
      _
    %p126 = scmp.lt.s32.totalorder %s9, 8
    // Predicated region
    $region17: #{conv3d_dtd.1} parent=5 // pred_check
      %p127 = pneg %p126
    $region18: #{conv3d_dtd.1} parent=5 // pred_check_branch
      %129 = sbr.rel (%p127) target = $region20
    $region19: #{conv3d_dtd.1} parent=5 // pred_region
      // Predicated region
      $region21: #{conv3d_dtd.1} parent=19 // pred_check
        %p130 = pneg %p29
      $region22: #{conv3d_dtd.1} parent=19 // pred_check_branch
        %132 = sbr.rel (%p130) target = $region24
      $region23: #{conv3d_dtd.1} parent=19 // pred_region
        %s133 = smul.u32 16, %s9
        %p134 = scmp.lt.s32.totalorder %s133, 127
        %s135 = scalar_select %p134, %s133, 127
        %s136 = smul.addr %s135, 8
        %s137 = scalar_lea.vmem %s0, %s136
        %s138 = smul.u32 16, %s9
      $region24: #{conv3d_dtd.1} parent=19 // pred_fallthru
        _
      // Predicated region
      $region25: #{conv3d_dtd.1} parent=19 // pred_check
        %p139 = pneg %p55
      $region26: #{conv3d_dtd.1} parent=19 // pred_check_branch
        %141 = sbr.rel (%p139) target = $region28
      $region27: #{conv3d_dtd.1} parent=19 // pred_region
        %s142 = smul.u32 16, %s9
        %p143 = scmp.lt.s32.totalorder %s142, 127
        %s144 = scalar_select %p143, %s142, 127
        %s145 = smul.addr %s144, 8
        %s146 = scalar_lea.vmem %s1, %s145
        %s147 = smul.u32 16, %s9
      $region28: #{conv3d_dtd.1} parent=19 // pred_fallthru
        _
    $region20: #{conv3d_dtd.1} parent=5 // pred_fallthru
      _
    %p148 = scmp.le.s32.totalorder 1, %s9
    %p149 = scmp.lt.s32.totalorder %s9, 9
    %p150 = pnand %p148, %p149
    %p151 = pneg %p150
    // Predicated region
    $region29: #{conv3d_dtd.1} parent=5 // pred_check
      _
    $region30: #{conv3d_dtd.1} parent=5 // pred_check_branch
      %153 = sbr.rel (%p150) target = $region32
    $region31: #{conv3d_dtd.1} parent=5 // pred_region
      %s154 = ssub.s32 %s9, 1
      %s155 = smul.u32 16, %s14
      %p156 = scmp.lt.s32.totalorder %s155, 127
      %s157 = scalar_select %p156, %s155, 127
      %s158 = smul.addr %s157, 8
      %s159 = scalar_lea.vmem %s0, %s158
      %p160 = pneg %p35
      %p161 = pneg %p32
      %s162 = smul.u32 16, %s14
      %p163 = scmp.lt.s32.totalorder %s162, 127
      %s164 = scalar_select %p163, %s162, 127
      %s165 = smul.addr %s164, 8
      %s166 = scalar_lea.vmem %s1, %s165
      %p167 = pneg %p61
      %p168 = pneg %p58
      %p169 = pneg %p82
      %p170 = pneg %p79
      %p171 = pneg %p108
      %p172 = pneg %p105
      %s173 = smul.u32 16, %s14
      %p174 = scmp.lt.s32.totalorder %s173, 127
      %s175 = scalar_select %p174, %s173, 127
      %s176 = smul.addr %s175, 8
      %s177 = scalar_lea.vmem %s3, %s176
      %s178 = smul.u32 16, %s14
      %p179 = scmp.lt.s32.totalorder %s178, 127
      %s180 = scalar_select %p179, %s178, 127
      %s181 = smul.addr %s180, 8
      %s182 = scalar_lea.vmem %s0, %s181
      %s183 = smul.u32 16, %s14
      %s184 = smul.u32 16, %s14
      %p185 = scmp.lt.s32.totalorder %s184, 127
      %s186 = scalar_select %p185, %s184, 127
      %s187 = smul.addr %s186, 8
      %s188 = scalar_lea.vmem %s1, %s187
      %s189 = smul.u32 16, %s14
      %s190 = smul.u32 16, %s14
      %p191 = scmp.lt.s32.totalorder %s190, 127
      %s192 = scalar_select %p191, %s190, 127
      %s193 = smul.addr %s192, 8
      %s194 = scalar_lea.vmem %s3, %s193
      %s195 = smul.u32 16, %s14
      %v196 = vld [vmem:[%s188] sm:$0xff]
      %v197 = vld [vmem:[%s188 + $0x8] sm:$0xff]
      %v198 = vld [vmem:[%s188 + $0x10] sm:$0xff]
      %v199 = vld [vmem:[%s188 + $0x18] sm:$0xff]
      %v200 = vld [vmem:[%s188 + $0x20] sm:$0xff]
      %v201 = vld [vmem:[%s188 + $0x28] sm:$0xff]
      %v202 = vld [vmem:[%s188 + $0x30] sm:$0xff]
      %v203 = vld [vmem:[%s188 + $0x38] sm:$0xff]
      %v204 = vld [vmem:[%s188 + $0x40] sm:$0xff]
      %v205 = vld [vmem:[%s188 + $0x48] sm:$0xff]
      %v206 = vld [vmem:[%s188 + $0x50] sm:$0xff]
      %v207 = vld [vmem:[%s188 + $0x58] sm:$0xff]
      %v208 = vld [vmem:[%s188 + $0x60] sm:$0xff]
      %v209 = vld [vmem:[%s188 + $0x68] sm:$0xff]
      %v210 = vld [vmem:[%s188 + $0x70] sm:$0xff]
      %v211 = vld [vmem:[%s188 + $0x78] sm:$0xff]
      %v212 = vld [vmem:[%s2] sm:$0xff]
      %v213 = vld [vmem:[%s2 + $0x8] sm:$0xff]
      %v214 = vld [vmem:[%s2 + $0x10] sm:$0xff]
      %v215 = vld [vmem:[%s2 + $0x18] sm:$0xff]
      %v216 = vld [vmem:[%s2 + $0x20] sm:$0xff]
      %v217 = vld [vmem:[%s2 + $0x28] sm:$0xff]
      %v218 = vld [vmem:[%s2 + $0x30] sm:$0xff]
      %v219 = vld [vmem:[%s2 + $0x38] sm:$0xff]
      %v220 = vld [vmem:[%s2 + $0x40] sm:$0xff]
      %v221 = vld [vmem:[%s2 + $0x48] sm:$0xff]
      %v222 = vld [vmem:[%s2 + $0x50] sm:$0xff]
      %v223 = vld [vmem:[%s2 + $0x58] sm:$0xff]
      %v224 = vld [vmem:[%s2 + $0x60] sm:$0xff]
      %v225 = vld [vmem:[%s2 + $0x68] sm:$0xff]
      %v226 = vld [vmem:[%s2 + $0x70] sm:$0xff]
      %v227 = vld [vmem:[%s2 + $0x78] sm:$0xff]
      %228 = vmatpush.xpose.msra.mxu0 %v227
      %229 = vmatpush.xpose.msra.mxu0 %v226
      %230 = vmatpush.xpose.msra.mxu0 %v225
      %231 = vmatpush.xpose.msra.mxu0 %v224
      %232 = vmatpush.xpose.msra.mxu0 %v223
      %233 = vmatpush.xpose.msra.mxu0 %v222
      %234 = vmatpush.xpose.msra.mxu0 %v221
      %235 = vmatpush.xpose.msra.mxu0 %v220
      %236 = vmatpush.xpose.msra.mxu0 %v219
      %237 = vmatpush.xpose.msra.mxu0 %v218
      %238 = vmatpush.xpose.msra.mxu0 %v217
      %239 = vmatpush.xpose.msra.mxu0 %v216
      %240 = vmatpush.xpose.msra.mxu0 %v215
      %241 = vmatpush.xpose.msra.mxu0 %v214
      %242 = vmatpush.xpose.msra.mxu0 %v213
      %243 = vmatpush.xpose.msra.mxu0 %v212
      %244 = vmatmul.f32.gmra.mxu0 %v196
      %v245 = vpop.f32.mrf.mxu0
      %v246 = vadd.f32 0.0, %v245
      %247 = vmatmul.f32.gmra.mxu0 %v197
      %v248 = vpop.f32.mrf.mxu0
      %v249 = vadd.f32 0.0, %v248
      %250 = vmatmul.f32.gmra.mxu0 %v198
      %v251 = vpop.f32.mrf.mxu0
      %v252 = vadd.f32 0.0, %v251
      %253 = vmatmul.f32.gmra.mxu0 %v199
      %v254 = vpop.f32.mrf.mxu0
      %v255 = vadd.f32 0.0, %v254
      %256 = vmatmul.f32.gmra.mxu0 %v200
      %v257 = vpop.f32.mrf.mxu0
      %v258 = vadd.f32 0.0, %v257
      %259 = vmatmul.f32.gmra.mxu0 %v201
      %v260 = vpop.f32.mrf.mxu0
      %v261 = vadd.f32 0.0, %v260
      %262 = vmatmul.f32.gmra.mxu0 %v202
      %v263 = vpop.f32.mrf.mxu0
      %v264 = vadd.f32 0.0, %v263
      %265 = vmatmul.f32.gmra.mxu0 %v203
      %v266 = vpop.f32.mrf.mxu0
      %v267 = vadd.f32 0.0, %v266
      %268 = vmatmul.f32.gmra.mxu0 %v204
      %v269 = vpop.f32.mrf.mxu0
      %v270 = vadd.f32 0.0, %v269
      %271 = vmatmul.f32.gmra.mxu0 %v205
      %v272 = vpop.f32.mrf.mxu0
      %v273 = vadd.f32 0.0, %v272
      %274 = vmatmul.f32.gmra.mxu0 %v206
      %v275 = vpop.f32.mrf.mxu0
      %v276 = vadd.f32 0.0, %v275
      %277 = vmatmul.f32.gmra.mxu0 %v207
      %v278 = vpop.f32.mrf.mxu0
      %v279 = vadd.f32 0.0, %v278
      %280 = vmatmul.f32.gmra.mxu0 %v208
      %v281 = vpop.f32.mrf.mxu0
      %v282 = vadd.f32 0.0, %v281
      %283 = vmatmul.f32.gmra.mxu0 %v209
      %v284 = vpop.f32.mrf.mxu0
      %v285 = vadd.f32 0.0, %v284
      %286 = vmatmul.f32.gmra.mxu0 %v210
      %v287 = vpop.f32.mrf.mxu0
      %v288 = vadd.f32 0.0, %v287
      %289 = vmatmul.f32.gmra.mxu0 %v211
      %v290 = vpop.f32.mrf.mxu0
      %v291 = vadd.f32 0.0, %v290
      %292 = vdwg.mxu0
      %v293 = vld [vmem:[%s182] sm:$0xff]
      %v294 = vld [vmem:[%s182 + $0x8] sm:$0xff]
      %v295 = vld [vmem:[%s182 + $0x10] sm:$0xff]
      %v296 = vld [vmem:[%s182 + $0x18] sm:$0xff]
      %v297 = vld [vmem:[%s182 + $0x20] sm:$0xff]
      %v298 = vld [vmem:[%s182 + $0x28] sm:$0xff]
      %v299 = vld [vmem:[%s182 + $0x30] sm:$0xff]
      %v300 = vld [vmem:[%s182 + $0x38] sm:$0xff]
      %v301 = vld [vmem:[%s182 + $0x40] sm:$0xff]
      %v302 = vld [vmem:[%s182 + $0x48] sm:$0xff]
      %v303 = vld [vmem:[%s182 + $0x50] sm:$0xff]
      %v304 = vld [vmem:[%s182 + $0x58] sm:$0xff]
      %v305 = vld [vmem:[%s182 + $0x60] sm:$0xff]
      %v306 = vld [vmem:[%s182 + $0x68] sm:$0xff]
      %v307 = vld [vmem:[%s182 + $0x70] sm:$0xff]
      %v308 = vld [vmem:[%s182 + $0x78] sm:$0xff]
      %v309 = vrcp.pop %v246
      %v310 = vmul.f32 %v246, %v309
      %v311 = vsub.f32 1.0, %v310
      %v312 = vmul.f32 %v309, %v311
      %v313 = vadd.f32 %v309, %v312
      %vm314 = vweird.f32 %v246
      %vm315 = vweird.f32 %v309
      %vm316 = vmor %vm314, %vm315
      %v317 = vsel %vm316, %v309, %v313
      %v318 = vand.u32 2147483647, %v246
      %vm319 = vcmp.eq.f32.partialorder %v318, 8.507059e+37
      %v320 = vand.u32 %v246, 2147483648
      %v321 = vor.u32 1.1754944e-38, %v320
      %v322 = vsel %vm319, %v321, %v317
      %v323 = vmul.f32 %v293, %v322
      %v324 = vrcp.pop %v249
      %v325 = vmul.f32 %v249, %v324
      %v326 = vsub.f32 1.0, %v325
      %v327 = vmul.f32 %v324, %v326
      %v328 = vadd.f32 %v324, %v327
      %vm329 = vweird.f32 %v249
      %vm330 = vweird.f32 %v324
      %vm331 = vmor %vm329, %vm330
      %v332 = vsel %vm331, %v324, %v328
      %v333 = vand.u32 2147483647, %v249
      %vm334 = vcmp.eq.f32.partialorder %v333, 8.507059e+37
      %v335 = vand.u32 %v249, 2147483648
      %v336 = vor.u32 1.1754944e-38, %v335
      %v337 = vsel %vm334, %v336, %v332
      %v338 = vmul.f32 %v294, %v337
      %v339 = vrcp.pop %v252
      %v340 = vmul.f32 %v252, %v339
      %v341 = vsub.f32 1.0, %v340
      %v342 = vmul.f32 %v339, %v341
      %v343 = vadd.f32 %v339, %v342
      %vm344 = vweird.f32 %v252
      %vm345 = vweird.f32 %v339
      %vm346 = vmor %vm344, %vm345
      %v347 = vsel %vm346, %v339, %v343
      %v348 = vand.u32 2147483647, %v252
      %vm349 = vcmp.eq.f32.partialorder %v348, 8.507059e+37
      %v350 = vand.u32 %v252, 2147483648
      %v351 = vor.u32 1.1754944e-38, %v350
      %v352 = vsel %vm349, %v351, %v347
      %v353 = vmul.f32 %v295, %v352
      %v354 = vrcp.pop %v255
      %v355 = vmul.f32 %v255, %v354
      %v356 = vsub.f32 1.0, %v355
      %v357 = vmul.f32 %v354, %v356
      %v358 = vadd.f32 %v354, %v357
      %vm359 = vweird.f32 %v255
      %vm360 = vweird.f32 %v354
      %vm361 = vmor %vm359, %vm360
      %v362 = vsel %vm361, %v354, %v358
      %v363 = vand.u32 2147483647, %v255
      %vm364 = vcmp.eq.f32.partialorder %v363, 8.507059e+37
      %v365 = vand.u32 %v255, 2147483648
      %v366 = vor.u32 1.1754944e-38, %v365
      %v367 = vsel %vm364, %v366, %v362
      %v368 = vmul.f32 %v296, %v367
      %v369 = vrcp.pop %v258
      %v370 = vmul.f32 %v258, %v369
      %v371 = vsub.f32 1.0, %v370
      %v372 = vmul.f32 %v369, %v371
      %v373 = vadd.f32 %v369, %v372
      %vm374 = vweird.f32 %v258
      %vm375 = vweird.f32 %v369
      %vm376 = vmor %vm374, %vm375
      %v377 = vsel %vm376, %v369, %v373
      %v378 = vand.u32 2147483647, %v258
      %vm379 = vcmp.eq.f32.partialorder %v378, 8.507059e+37
      %v380 = vand.u32 %v258, 2147483648
      %v381 = vor.u32 1.1754944e-38, %v380
      %v382 = vsel %vm379, %v381, %v377
      %v383 = vmul.f32 %v297, %v382
      %v384 = vrcp.pop %v261
      %v385 = vmul.f32 %v261, %v384
      %v386 = vsub.f32 1.0, %v385
      %v387 = vmul.f32 %v384, %v386
      %v388 = vadd.f32 %v384, %v387
      %vm389 = vweird.f32 %v261
      %vm390 = vweird.f32 %v384
      %vm391 = vmor %vm389, %vm390
      %v392 = vsel %vm391, %v384, %v388
      %v393 = vand.u32 2147483647, %v261
      %vm394 = vcmp.eq.f32.partialorder %v393, 8.507059e+37
      %v395 = vand.u32 %v261, 2147483648
      %v396 = vor.u32 1.1754944e-38, %v395
      %v397 = vsel %vm394, %v396, %v392
      %v398 = vmul.f32 %v298, %v397
      %v399 = vrcp.pop %v264
      %v400 = vmul.f32 %v264, %v399
      %v401 = vsub.f32 1.0, %v400
      %v402 = vmul.f32 %v399, %v401
      %v403 = vadd.f32 %v399, %v402
      %vm404 = vweird.f32 %v264
      %vm405 = vweird.f32 %v399
      %vm406 = vmor %vm404, %vm405
      %v407 = vsel %vm406, %v399, %v403
      %v408 = vand.u32 2147483647, %v264
      %vm409 = vcmp.eq.f32.partialorder %v408, 8.507059e+37
      %v410 = vand.u32 %v264, 2147483648
      %v411 = vor.u32 1.1754944e-38, %v410
      %v412 = vsel %vm409, %v411, %v407
      %v413 = vmul.f32 %v299, %v412
      %v414 = vrcp.pop %v267
      %v415 = vmul.f32 %v267, %v414
      %v416 = vsub.f32 1.0, %v415
      %v417 = vmul.f32 %v414, %v416
      %v418 = vadd.f32 %v414, %v417
      %vm419 = vweird.f32 %v267
      %vm420 = vweird.f32 %v414
      %vm421 = vmor %vm419, %vm420
      %v422 = vsel %vm421, %v414, %v418
      %v423 = vand.u32 2147483647, %v267
      %vm424 = vcmp.eq.f32.partialorder %v423, 8.507059e+37
      %v425 = vand.u32 %v267, 2147483648
      %v426 = vor.u32 1.1754944e-38, %v425
      %v427 = vsel %vm424, %v426, %v422
      %v428 = vmul.f32 %v300, %v427
      %v429 = vrcp.pop %v270
      %v430 = vmul.f32 %v270, %v429
      %v431 = vsub.f32 1.0, %v430
      %v432 = vmul.f32 %v429, %v431
      %v433 = vadd.f32 %v429, %v432
      %vm434 = vweird.f32 %v270
      %vm435 = vweird.f32 %v429
      %vm436 = vmor %vm434, %vm435
      %v437 = vsel %vm436, %v429, %v433
      %v438 = vand.u32 2147483647, %v270
      %vm439 = vcmp.eq.f32.partialorder %v438, 8.507059e+37
      %v440 = vand.u32 %v270, 2147483648
      %v441 = vor.u32 1.1754944e-38, %v440
      %v442 = vsel %vm439, %v441, %v437
      %v443 = vmul.f32 %v301, %v442
      %v444 = vrcp.pop %v273
      %v445 = vmul.f32 %v273, %v444
      %v446 = vsub.f32 1.0, %v445
      %v447 = vmul.f32 %v444, %v446
      %v448 = vadd.f32 %v444, %v447
      %vm449 = vweird.f32 %v273
      %vm450 = vweird.f32 %v444
      %vm451 = vmor %vm449, %vm450
      %v452 = vsel %vm451, %v444, %v448
      %v453 = vand.u32 2147483647, %v273
      %vm454 = vcmp.eq.f32.partialorder %v453, 8.507059e+37
      %v455 = vand.u32 %v273, 2147483648
      %v456 = vor.u32 1.1754944e-38, %v455
      %v457 = vsel %vm454, %v456, %v452
      %v458 = vmul.f32 %v302, %v457
      %v459 = vrcp.pop %v276
      %v460 = vmul.f32 %v276, %v459
      %v461 = vsub.f32 1.0, %v460
      %v462 = vmul.f32 %v459, %v461
      %v463 = vadd.f32 %v459, %v462
      %vm464 = vweird.f32 %v276
      %vm465 = vweird.f32 %v459
      %vm466 = vmor %vm464, %vm465
      %v467 = vsel %vm466, %v459, %v463
      %v468 = vand.u32 2147483647, %v276
      %vm469 = vcmp.eq.f32.partialorder %v468, 8.507059e+37
      %v470 = vand.u32 %v276, 2147483648
      %v471 = vor.u32 1.1754944e-38, %v470
      %v472 = vsel %vm469, %v471, %v467
      %v473 = vmul.f32 %v303, %v472
      %v474 = vrcp.pop %v279
      %v475 = vmul.f32 %v279, %v474
      %v476 = vsub.f32 1.0, %v475
      %v477 = vmul.f32 %v474, %v476
      %v478 = vadd.f32 %v474, %v477
      %vm479 = vweird.f32 %v279
      %vm480 = vweird.f32 %v474
      %vm481 = vmor %vm479, %vm480
      %v482 = vsel %vm481, %v474, %v478
      %v483 = vand.u32 2147483647, %v279
      %vm484 = vcmp.eq.f32.partialorder %v483, 8.507059e+37
      %v485 = vand.u32 %v279, 2147483648
      %v486 = vor.u32 1.1754944e-38, %v485
      %v487 = vsel %vm484, %v486, %v482
      %v488 = vmul.f32 %v304, %v487
      %v489 = vrcp.pop %v282
      %v490 = vmul.f32 %v282, %v489
      %v491 = vsub.f32 1.0, %v490
      %v492 = vmul.f32 %v489, %v491
      %v493 = vadd.f32 %v489, %v492
      %vm494 = vweird.f32 %v282
      %vm495 = vweird.f32 %v489
      %vm496 = vmor %vm494, %vm495
      %v497 = vsel %vm496, %v489, %v493
      %v498 = vand.u32 2147483647, %v282
      %vm499 = vcmp.eq.f32.partialorder %v498, 8.507059e+37
      %v500 = vand.u32 %v282, 2147483648
      %v501 = vor.u32 1.1754944e-38, %v500
      %v502 = vsel %vm499, %v501, %v497
      %v503 = vmul.f32 %v305, %v502
      %v504 = vrcp.pop %v285
      %v505 = vmul.f32 %v285, %v504
      %v506 = vsub.f32 1.0, %v505
      %v507 = vmul.f32 %v504, %v506
      %v508 = vadd.f32 %v504, %v507
      %vm509 = vweird.f32 %v285
      %vm510 = vweird.f32 %v504
      %vm511 = vmor %vm509, %vm510
      %v512 = vsel %vm511, %v504, %v508
      %v513 = vand.u32 2147483647, %v285
      %vm514 = vcmp.eq.f32.partialorder %v513, 8.507059e+37
      %v515 = vand.u32 %v285, 2147483648
      %v516 = vor.u32 1.1754944e-38, %v515
      %v517 = vsel %vm514, %v516, %v512
      %v518 = vmul.f32 %v306, %v517
      %v519 = vrcp.pop %v288
      %v520 = vmul.f32 %v288, %v519
      %v521 = vsub.f32 1.0, %v520
      %v522 = vmul.f32 %v519, %v521
      %v523 = vadd.f32 %v519, %v522
      %vm524 = vweird.f32 %v288
      %vm525 = vweird.f32 %v519
      %vm526 = vmor %vm524, %vm525
      %v527 = vsel %vm526, %v519, %v523
      %v528 = vand.u32 2147483647, %v288
      %vm529 = vcmp.eq.f32.partialorder %v528, 8.507059e+37
      %v530 = vand.u32 %v288, 2147483648
      %v531 = vor.u32 1.1754944e-38, %v530
      %v532 = vsel %vm529, %v531, %v527
      %v533 = vmul.f32 %v307, %v532
      %v534 = vrcp.pop %v291
      %v535 = vmul.f32 %v291, %v534
      %v536 = vsub.f32 1.0, %v535
      %v537 = vmul.f32 %v534, %v536
      %v538 = vadd.f32 %v534, %v537
      %vm539 = vweird.f32 %v291
      %vm540 = vweird.f32 %v534
      %vm541 = vmor %vm539, %vm540
      %v542 = vsel %vm541, %v534, %v538
      %v543 = vand.u32 2147483647, %v291
      %vm544 = vcmp.eq.f32.partialorder %v543, 8.507059e+37
      %v545 = vand.u32 %v291, 2147483648
      %v546 = vor.u32 1.1754944e-38, %v545
      %v547 = vsel %vm544, %v546, %v542
      %v548 = vmul.f32 %v308, %v547
      %549 = vmatpush.msra.mxu0 %v227
      %550 = vmatpush.msra.mxu0 %v226
      %551 = vmatpush.msra.mxu0 %v225
      %552 = vmatpush.msra.mxu0 %v224
      %553 = vmatpush.msra.mxu0 %v223
      %554 = vmatpush.msra.mxu0 %v222
      %555 = vmatpush.msra.mxu0 %v221
      %556 = vmatpush.msra.mxu0 %v220
      %557 = vmatpush.msra.mxu0 %v219
      %558 = vmatpush.msra.mxu0 %v218
      %559 = vmatpush.msra.mxu0 %v217
      %560 = vmatpush.msra.mxu0 %v216
      %561 = vmatpush.msra.mxu0 %v215
      %562 = vmatpush.msra.mxu0 %v214
      %563 = vmatpush.msra.mxu0 %v213
      %564 = vmatpush.msra.mxu0 %v212
      %565 = vmatmul.f32.gmra.mxu0 %v323
      %v566 = vpop.f32.mrf.mxu0
      %v567 = vadd.f32 0.0, %v566
      %568 = vmatmul.f32.gmra.mxu0 %v338
      %v569 = vpop.f32.mrf.mxu0
      %v570 = vadd.f32 0.0, %v569
      %571 = vmatmul.f32.gmra.mxu0 %v353
      %v572 = vpop.f32.mrf.mxu0
      %v573 = vadd.f32 0.0, %v572
      %574 = vmatmul.f32.gmra.mxu0 %v368
      %v575 = vpop.f32.mrf.mxu0
      %v576 = vadd.f32 0.0, %v575
      %577 = vmatmul.f32.gmra.mxu0 %v383
      %v578 = vpop.f32.mrf.mxu0
      %v579 = vadd.f32 0.0, %v578
      %580 = vmatmul.f32.gmra.mxu0 %v398
      %v581 = vpop.f32.mrf.mxu0
      %v582 = vadd.f32 0.0, %v581
      %583 = vmatmul.f32.gmra.mxu0 %v413
      %v584 = vpop.f32.mrf.mxu0
      %v585 = vadd.f32 0.0, %v584
      %586 = vmatmul.f32.gmra.mxu0 %v428
      %v587 = vpop.f32.mrf.mxu0
      %v588 = vadd.f32 0.0, %v587
      %589 = vmatmul.f32.gmra.mxu0 %v443
      %v590 = vpop.f32.mrf.mxu0
      %v591 = vadd.f32 0.0, %v590
      %592 = vmatmul.f32.gmra.mxu0 %v458
      %v593 = vpop.f32.mrf.mxu0
      %v594 = vadd.f32 0.0, %v593
      %595 = vmatmul.f32.gmra.mxu0 %v473
      %v596 = vpop.f32.mrf.mxu0
      %v597 = vadd.f32 0.0, %v596
      %598 = vmatmul.f32.gmra.mxu0 %v488
      %v599 = vpop.f32.mrf.mxu0
      %v600 = vadd.f32 0.0, %v599
      %601 = vmatmul.f32.gmra.mxu0 %v503
      %v602 = vpop.f32.mrf.mxu0
      %v603 = vadd.f32 0.0, %v602
      %604 = vmatmul.f32.gmra.mxu0 %v518
      %v605 = vpop.f32.mrf.mxu0
      %v606 = vadd.f32 0.0, %v605
      %607 = vmatmul.f32.gmra.mxu0 %v533
      %v608 = vpop.f32.mrf.mxu0
      %v609 = vadd.f32 0.0, %v608
      %610 = vmatmul.f32.gmra.mxu0 %v548
      %v611 = vpop.f32.mrf.mxu0
      %v612 = vadd.f32 0.0, %v611
      %613 = vdwg.mxu0
      %614 = vst [vmem:[%s194] sm:$0xff] %v567
      %615 = vst [vmem:[%s194 + $0x8] sm:$0xff] %v570
      %616 = vst [vmem:[%s194 + $0x10] sm:$0xff] %v573
      %617 = vst [vmem:[%s194 + $0x18] sm:$0xff] %v576
      %618 = vst [vmem:[%s194 + $0x20] sm:$0xff] %v579
      %619 = vst [vmem:[%s194 + $0x28] sm:$0xff] %v582
      %620 = vst [vmem:[%s194 + $0x30] sm:$0xff] %v585
      %621 = vst [vmem:[%s194 + $0x38] sm:$0xff] %v588
      %622 = vst [vmem:[%s194 + $0x40] sm:$0xff] %v591
      %623 = vst [vmem:[%s194 + $0x48] sm:$0xff] %v594
      %624 = vst [vmem:[%s194 + $0x50] sm:$0xff] %v597
      %625 = vst [vmem:[%s194 + $0x58] sm:$0xff] %v600
      %626 = vst [vmem:[%s194 + $0x60] sm:$0xff] %v603
      %627 = vst [vmem:[%s194 + $0x68] sm:$0xff] %v606
      %628 = vst [vmem:[%s194 + $0x70] sm:$0xff] %v609
      %629 = vst [vmem:[%s194 + $0x78] sm:$0xff] %v612
      %s630 = smul.u32 16, %s14
      %p631 = scmp.lt.s32.totalorder %s630, 127
      %s632 = scalar_select %p631, %s630, 127
      %s633 = smul.addr %s632, 8
      %s634 = scalar_lea.vmem %s3, %s633
      // Predicated region
      $region33: #{conv3d_dtd.1} parent=31 // pred_check
        %p635 = pneg %p105
      $region34: #{conv3d_dtd.1} parent=31 // pred_check_branch
        %637 = sbr.rel (%p635) target = $region36
      $region35: #{conv3d_dtd.1} parent=31 // pred_region
        %s638 = smul.u32 16, %s14
      $region36: #{conv3d_dtd.1} parent=31 // pred_fallthru
        _
    $region32: #{conv3d_dtd.1} parent=5 // pred_fallthru
      _
    %p639 = scmp.le.s32.totalorder 2, %s9
    // Predicated region
    $region37: #{conv3d_dtd.1} parent=5 // pred_check
      %p640 = pneg %p639
    $region38: #{conv3d_dtd.1} parent=5 // pred_check_branch
      %642 = sbr.rel (%p640) target = $region40
    $region39: #{conv3d_dtd.1} parent=5 // pred_region
      %s643 = ssub.s32 %s9, 2
      // Predicated region
      $region41: #{conv3d_dtd.1} parent=39 // pred_check
        %p644 = pneg %p111
      $region42: #{conv3d_dtd.1} parent=39 // pred_check_branch
        %646 = sbr.rel (%p644) target = $region44
      $region43: #{conv3d_dtd.1} parent=39 // pred_region
        %s647 = smul.u32 16, %s15
        %p648 = scmp.lt.s32.totalorder %s647, 127
        %s649 = scalar_select %p648, %s647, 127
        %s650 = smul.addr %s649, 8
        %s651 = scalar_lea.vmem %s3, %s650
      $region44: #{conv3d_dtd.1} parent=39 // pred_fallthru
        _
    $region40: #{conv3d_dtd.1} parent=5 // pred_fallthru
      _
  $region6: #{conv3d_dtd.1} parent=0 // loop_footer
    %s13 = sadd.s32 1, %s9
  $region7: #{conv3d_dtd.1} parent=0 // loop_footer_branch
    %8 = sbr.rel target = $region3
  $region8: #{conv3d_dtd.1} parent=0 // loop_exit
    _

</llo_original>
